<compile_context>
chip_gen: v6e
topology: v6e:2x2x1
jax: 0.10.0
libtpu: 0.0.40
codegen_flags: <defaults>
</compile_context>

<pallas_src>
import functools
import math

import jax
import jax.numpy as jnp
from jax.experimental import pallas as pl
from jax.experimental.pallas import tpu as pltpu


def _erf_approx(x):
    # Abramowitz & Stegun 7.1.26 rational approximation, |err| <= 1.5e-7.
    # The divide is an approximate EUP reciprocal; the rest is VPU mul/add +
    # one EUP exp.  Computed in f32.
    a1, a2, a3, a4, a5 = 0.254829592, -0.284496736, 1.421413741, -1.453152027, 1.061405429
    p = 0.3275911
    s = jnp.where(x >= 0.0, 1.0, -1.0)
    ax = jnp.abs(x)
    t = pl.reciprocal(1.0 + p * ax, approx=True)
    poly = ((((a5 * t + a4) * t + a3) * t + a2) * t + a1) * t
    return s * (1.0 - poly * jnp.exp(-ax * ax))


def _gelu_exact(x):
    # PyTorch nn.GELU() default = exact (erf-based) GELU.
    return 0.5 * x * (1.0 + _erf_approx(x * (1.0 / math.sqrt(2.0))))


def gating_kernel(x_ref, w1_ref, b1_ref, w2q_ref, b2q_ref, kbig_ref, g_ref,
                  vbig_ref, wo3_ref, bo3_ref, w4p_ref, b4p_ref, out_ref, *,
                  seq_len):
    f32, bf16 = jnp.float32, jnp.bfloat16
    R = x_ref.shape[0]
    TB = R // seq_len
    HL = kbig_ref.shape[1]

    x = x_ref[...]                                                            # (R, E) bf16

    # query_projection MLP (layer-2 fused with MHA q in-proj + 1/sqrt(hd) scale).
    h1 = _gelu_exact(jnp.dot(x, w1_ref[...], preferred_element_type=f32) + b1_ref[...])     # (R, 2T) f32
    qp = jnp.dot(h1.astype(bf16), w2q_ref[...], preferred_element_type=f32) + b2q_ref[...]  # (R, T)  f32

    # All-head attention logits in ONE MXU matmul against the block-diagonal
    # per-head K^T matrix (scale already folded into qp via w2q/b2q).
    logits = jnp.dot(qp.astype(bf16), kbig_ref[...], preferred_element_type=f32)            # (R, H*L)

    # Single row-wide max (softmax is shift-invariant per head: the global row
    # max is a constant within every head's group) -> one XLU reduce.
    m = jnp.max(logits, axis=-1, keepdims=True)
    e = jnp.exp(logits - m)
    # Per-head softmax denominators via one matmul with a block-of-ones matrix.
    denom = jnp.dot(e.astype(bf16), g_ref[...], preferred_element_type=f32)                 # (R, H*L)
    attn = e * pl.reciprocal(denom, approx=True)                                            # (R, H*L)

    # Mean over seq_len: split rows back to (TB, S, H*L) and reduce over S on
    # the XLU (1/S folded into vbig).  Then per-head value contraction via the
    # block-diagonal V matrix.
    abar = jnp.sum(attn.reshape(TB, seq_len, HL), axis=1)                                   # (TB, H*L)
    agg = jnp.dot(abar.astype(bf16), vbig_ref[...], preferred_element_type=f32)             # (TB, T)

    # out_proj fused with output_layer layer-1, GELU, then the lane-padded
    # final Linear + softmax.  Padded logits carry a -1e9 bias -> gate == 0.
    z = _gelu_exact(jnp.dot(agg.astype(bf16), wo3_ref[...], preferred_element_type=f32)
                    + bo3_ref[...])                                                         # (TB, 2T)
    lo = jnp.dot(z.astype(bf16), w4p_ref[...], preferred_element_type=f32) + b4p_ref[...]   # (TB, LPAD)
    e2 = jnp.exp(lo - jnp.max(lo, axis=-1, keepdims=True))
    out_ref[...] = e2 * pl.reciprocal(jnp.sum(e2, axis=-1, keepdims=True), approx=True)


def _pick_batch_tile(B, S, target_rows=512, max_rows_single=4096):
    """Choose (TB, nb): ~target_rows rows per grid step, sublane-legal, minimal padding."""
    if B <= 8 or B * S <= max_rows_single:
        return B, 1                               # single full-extent block (no 8-row constraint)
    TB = max(8, min(B, (max(1, target_rows // max(S, 1)) // 8) * 8))
    # Keep >= 2 grid steps when there is plenty of work so the "parallel" grid
    # axis can shard across both TensorCores on v7x.
    if TB * 2 > B:
        TB = max(8, (B // 2 // 8) * 8)
    best_t, best_key = 8, None
    for t in range(8, TB + 1, 8):                 # multiple of 8; least zero-padded tail; larger tile on ties
        nb = -(-B // t)
        key = (nb * t - B, -t)
        if best_key is None or key < best_key:
            best_key, best_t = key, t
    return best_t, -(-B // best_t)


def lora_gating_forward(query, lora_keys, lora_values, params, *,
                        num_heads, head_dim, batch_tile=None):
    B, S, E = query.shape
    L = lora_keys.shape[0]
    H, hd = num_heads, head_dim
    T = H * hd
    HL = H * L
    f32, bf16 = jnp.float32, jnp.bfloat16
    (w1, b1, w2, b2, wq, bq, wk, bk, wv, bv, wo, bo, w3, b3, w4, b4) = params

    # ---------- one-time algebraic fusions & batch-invariant projections ----------
    scale = 1.0 / math.sqrt(hd)
    wq_s = wq * scale
    bq_s = bq * scale
    w2q = w2 @ wq_s                      # (2T, T)  MLP layer-2 + q in-proj + scale
    b2q = b2 @ wq_s + bq_s               # (1, T)

    keys2d = lora_keys.reshape(L, T).astype(f32)
    vals2d = lora_values.reshape(L, T).astype(f32)
    kp = keys2d @ wk + bk                # (L, T)   hoisted key projection
    vp = vals2d @ wv + bv                # (L, T)   hoisted value projection

    # Block-diagonal per-head packs: one matmul handles all heads in-kernel.
    kbig = jnp.zeros((T, HL), f32)       # kbig[h*hd:(h+1)*hd, h*L:(h+1)*L] = kp_h^T
    vbig = jnp.zeros((HL, T), f32)       # vbig[h*L:(h+1)*L, h*hd:(h+1)*hd] = vp_h
    for h in range(H):
        kbig = kbig.at[h * hd:(h + 1) * hd, h * L:(h + 1) * L].set(kp[:, h * hd:(h + 1) * hd].T)
        vbig = vbig.at[h * L:(h + 1) * L, h * hd:(h + 1) * hd].set(vp[:, h * hd:(h + 1) * hd])
    vbig = vbig * (1.0 / S)              # fold the seq-mean 1/S into the value pack
    gmat = jnp.kron(jnp.eye(H, dtype=f32), jnp.ones((L, L), f32))   # grouped softmax sums

    wo3 = wo @ w3                        # (T, 2T)  out_proj fused with output_layer L1
    bo3 = bo @ w3 + b3                   # (1, 2T)

    # Lane-dense final Linear: pad columns to a multiple of 128; padded columns
    # get weight 0 and bias -1e9 (bias stays f32) so their softmax prob is 0.
    LPAD = max(128, ((L + 127) // 128) * 128)
    w4p = jnp.zeros((2 * T, LPAD), f32).at[:, :L].set(w4)
    b4p = jnp.full((1, LPAD), -1e9, f32).at[:, :L].set(b4)

    # bf16 MXU operands (f32 accumulation stays in-kernel); biases remain f32.
    w1_b, w2q_b = w1.astype(bf16), w2q.astype(bf16)
    kbig_b, gmat_b, vbig_b = kbig.astype(bf16), gmat.astype(bf16), vbig.astype(bf16)
    wo3_b, w4p_b = wo3.astype(bf16), w4p.astype(bf16)

    # ---------- batch tiling: flatten (B, S, E) -> (B*S, E) rows ----------
    if batch_tile is not None:
        TB = int(batch_tile)
        if TB >= B:
            TB, nb = B, 1
        else:
            TB = max(8, ((TB + 7) // 8) * 8)     # sublane-legal when tiled
            nb = -(-B // TB)
    else:
        TB, nb = _pick_batch_tile(B, S)
    Bpad = nb * TB
    R = TB * S

    qflat = query.reshape(B * S, E).astype(bf16)
    if Bpad != B:
        qflat = jnp.concatenate(
            [qflat, jnp.zeros(((Bpad - B) * S, E), bf16)], axis=0)

    kernel = functools.partial(gating_kernel, seq_len=S)

    def full_spec(shape):
        nd = len(shape)
        return pl.BlockSpec(shape, lambda *_: (0,) * nd)   # VMEM-resident across steps

    out = pl.pallas_call(
        kernel,
        out_shape=jax.ShapeDtypeStruct((Bpad, LPAD), f32),
        grid_spec=pltpu.PrefetchScalarGridSpec(
            num_scalar_prefetch=0,
            grid=(nb,),
            in_specs=[
                pl.BlockSpec((R, E), lambda i: (i, 0)),            # flattened query rows (bf16)
                full_spec((E, 2 * T)), full_spec((1, 2 * T)),      # MLP layer 1 (w bf16, b f32)
                full_spec((2 * T, T)), full_spec((1, T)),          # fused layer2 + q-proj (+scale)
                full_spec((T, HL)),                                # block-diag K^T (all heads)
                full_spec((HL, HL)),                               # grouped-softmax sum matrix
                full_spec((HL, T)),                                # block-diag V / S (all heads)
                full_spec((T, 2 * T)), full_spec((1, 2 * T)),      # out_proj fused w/ output L1
                full_spec((2 * T, LPAD)), full_spec((1, LPAD)),    # padded output L2
            ],
            out_specs=pl.BlockSpec((TB, LPAD), lambda i: (i, 0)),
        ),
        compiler_params=pltpu.CompilerParams(
            dimension_semantics=("parallel",),
            vmem_limit_bytes=32 * 1024 * 1024,
        ),
    )(qflat, w1_b, b1, w2q_b, b2q, kbig_b, gmat_b, vbig_b, wo3_b, bo3, w4p_b, b4p)

    return out[:B, :L]


def reference_forward(query, lora_keys, lora_values, params, *, num_heads, head_dim):
    """Pure-JAX reference mirroring the PyTorch module exactly (f32)."""
    (w1, b1, w2, b2, wq, bq, wk, bk, wv, bv, wo, bo, w3, b3, w4, b4) = params
    B, S, E = query.shape
    L = lora_keys.shape[0]
    H, hd = num_heads, head_dim
    T = H * hd
    keys2d = lora_keys.reshape(L, T)
    vals2d = lora_values.reshape(L, T)

    h = jax.nn.gelu(query @ w1 + b1, approximate=False)
    p = h @ w2 + b2                                  # query_projection output (B,S,T)
    q = p @ wq + bq                                  # MHA q in-proj
    k = keys2d @ wk + bk                             # MHA k in-proj (L,T)
    v = vals2d @ wv + bv                             # MHA v in-proj (L,T)

    qh = q.reshape(B, S, H, hd)
    kh = k.reshape(L, H, hd)
    vh = v.reshape(L, H, hd)
    logits = jnp.einsum('bshd,lhd->bhsl', qh, kh) / jnp.sqrt(jnp.float32(hd))
    attn = jax.nn.softmax(logits, axis=-1)           # (B,H,S,L)
    ctx = jnp.einsum('bhsl,lhd->bshd', attn, vh).reshape(B, S, T)
    attn_out = ctx @ wo + bo                         # MHA out_proj
    agg = attn_out.mean(axis=1)                      # mean over seq_len (B,T)
    z = jax.nn.gelu(agg @ w3 + b3, approximate=False)
    return jax.nn.softmax(z @ w4 + b4, axis=-1)      # output_layer softmax (B,L)


if __name__ == "__main__":
    # Small shapes consistent with the module's forward.
    B, S, E = 2, 8, 32           # batch, seq_len, embed_dim
    H, hd, L = 4, 8, 8           # num_heads, head_dim, num_loras
    T = H * hd                   # total_dim

    key = jax.random.PRNGKey(0)
    ks = jax.random.split(key, 20)
    init = 0.05
    f32 = jnp.float32

    query = jax.random.normal(ks[0], (B, S, E), f32)
    lora_keys = jax.random.normal(ks[1], (L, H, hd), f32)
    lora_values = jax.random.normal(ks[2], (L, H, hd), f32)

    # Deterministic synthetic parameters (pre-transposed: y = x @ W + b).
    w1 = jax.random.normal(ks[3], (E, 2 * T), f32) * init        # Linear(E, 2T)
    b1 = jax.random.normal(ks[4], (1, 2 * T), f32) * init
    w2 = jax.random.normal(ks[5], (2 * T, T), f32) * init        # Linear(2T, T)
    b2 = jax.random.normal(ks[6], (1, T), f32) * init
    wq = jax.random.normal(ks[7], (T, T), f32) * init            # in_proj_weight[:T].T
    bq = jax.random.normal(ks[8], (1, T), f32) * init
    wk = jax.random.normal(ks[9], (T, T), f32) * init            # in_proj_weight[T:2T].T
    bk = jax.random.normal(ks[10], (1, T), f32) * init
    wv = jax.random.normal(ks[11], (T, T), f32) * init           # in_proj_weight[2T:].T
    bv = jax.random.normal(ks[12], (1, T), f32) * init
    wo = jax.random.normal(ks[13], (T, T), f32) * init           # out_proj.weight.T
    bo = jax.random.normal(ks[14], (1, T), f32) * init
    w3 = jax.random.normal(ks[15], (T, 2 * T), f32) * init       # output_layer Linear(T, 2T)
    b3 = jax.random.normal(ks[16], (1, 2 * T), f32) * init
    w4 = jax.random.normal(ks[17], (2 * T, L), f32) * init       # output_layer Linear(2T, L)
    b4 = jax.random.normal(ks[18], (1, L), f32) * init

    params = (w1, b1, w2, b2, wq, bq, wk, bk, wv, bv, wo, bo, w3, b3, w4, b4)

    out = lora_gating_forward(query, lora_keys, lora_values, params,
                              num_heads=H, head_dim=hd)
    out = jax.block_until_ready(out)

    ref = reference_forward(query, lora_keys, lora_values, params,
                            num_heads=H, head_dim=hd)

    assert out.shape == (B, L), out.shape
    err = float(jnp.max(jnp.abs(out - ref)))
    # Tolerance covers bf16 MXU inputs, approx EUP reciprocals, erf approximation
    # and the algebraic re-association of the fused projections.
    if err > 2e-3:
        raise AssertionError(f"mismatch vs reference: max abs diff = {err}")
    print("KERNEL_OK")
</pallas_src>

<mosaic_0001>
module attributes {stable_mosaic.version = 11 : i64} {
  func.func @gating_kernel(%arg0: i32, %arg1: memref<16x32xbf16, #tpu.memory_space<vmem>>, %arg2: memref<32x64xbf16, #tpu.memory_space<vmem>>, %arg3: memref<1x64xf32, #tpu.memory_space<vmem>>, %arg4: memref<64x32xbf16, #tpu.memory_space<vmem>>, %arg5: memref<1x32xf32, #tpu.memory_space<vmem>>, %arg6: memref<32x32xbf16, #tpu.memory_space<vmem>>, %arg7: memref<32x32xbf16, #tpu.memory_space<vmem>>, %arg8: memref<32x32xbf16, #tpu.memory_space<vmem>>, %arg9: memref<32x64xbf16, #tpu.memory_space<vmem>>, %arg10: memref<1x64xf32, #tpu.memory_space<vmem>>, %arg11: memref<64x128xbf16, #tpu.memory_space<vmem>>, %arg12: memref<1x128xf32, #tpu.memory_space<vmem>>, %arg13: memref<2x128xf32, #tpu.memory_space<vmem>>) attributes {dimension_semantics = [#tpu.dimension_semantics<parallel>], iteration_bounds = array<i64: 1>, scalar_prefetch = 0 : i64, scratch_operands = 0 : i64, tpu.core_type = #tpu.core_type<tc>, window_params = [{transform_indices = @transform_0, window_bounds = array<i64: 16, 32>}, {pipeline_mode = #tpu.pipeline_mode<synchronous>, transform_indices = @transform_1, window_bounds = array<i64: 32, 64>}, {pipeline_mode = #tpu.pipeline_mode<synchronous>, transform_indices = @transform_2, window_bounds = array<i64: 1, 64>}, {pipeline_mode = #tpu.pipeline_mode<synchronous>, transform_indices = @transform_3, window_bounds = array<i64: 64, 32>}, {pipeline_mode = #tpu.pipeline_mode<synchronous>, transform_indices = @transform_4, window_bounds = array<i64: 1, 32>}, {pipeline_mode = #tpu.pipeline_mode<synchronous>, transform_indices = @transform_5, window_bounds = array<i64: 32, 32>}, {pipeline_mode = #tpu.pipeline_mode<synchronous>, transform_indices = @transform_6, window_bounds = array<i64: 32, 32>}, {pipeline_mode = #tpu.pipeline_mode<synchronous>, transform_indices = @transform_7, window_bounds = array<i64: 32, 32>}, {pipeline_mode = #tpu.pipeline_mode<synchronous>, transform_indices = @transform_8, window_bounds = array<i64: 32, 64>}, {pipeline_mode = #tpu.pipeline_mode<synchronous>, transform_indices = @transform_9, window_bounds = array<i64: 1, 64>}, {pipeline_mode = #tpu.pipeline_mode<synchronous>, transform_indices = @transform_10, window_bounds = array<i64: 64, 128>}, {pipeline_mode = #tpu.pipeline_mode<synchronous>, transform_indices = @transform_11, window_bounds = array<i64: 1, 128>}, {transform_indices = @transform_12, window_bounds = array<i64: 2, 128>}]} {
    %c0 = arith.constant 0 : index
    %c0_0 = arith.constant 0 : index
    %0 = vector.load %arg1[%c0, %c0_0] : memref<16x32xbf16, #tpu.memory_space<vmem>>, vector<16x32xbf16>
    %c0_1 = arith.constant 0 : index
    %c0_2 = arith.constant 0 : index
    %1 = vector.load %arg2[%c0_1, %c0_2] : memref<32x64xbf16, #tpu.memory_space<vmem>>, vector<32x64xbf16>
    %cst = arith.constant dense<0.000000e+00> : vector<16x64xf32>
    %2 = tpu.matmul %0, %1, %cst {dimension_numbers = #tpu.dot_dimension_numbers<[1], [0], [0], [1], [0, 0, 1, 1], [], []>} : vector<16x32xbf16>, vector<32x64xbf16>, vector<16x64xf32> -> vector<16x64xf32>
    %c0_3 = arith.constant 0 : index
    %c0_4 = arith.constant 0 : index
    %3 = vector.load %arg3[%c0_3, %c0_4] : memref<1x64xf32, #tpu.memory_space<vmem>>, vector<1x64xf32>
    %4 = vector.broadcast %3 : vector<1x64xf32> to vector<16x64xf32>
    %5 = arith.addf %2, %4 : vector<16x64xf32>
    %cst_5 = arith.constant 5.000000e-01 : f32
    %6 = vector.broadcast %cst_5 : f32 to vector<16x64xf32>
    %7 = arith.mulf %6, %5 : vector<16x64xf32>
    %cst_6 = arith.constant 0.707106769 : f32
    %8 = vector.broadcast %cst_6 : f32 to vector<16x64xf32>
    %9 = arith.mulf %5, %8 : vector<16x64xf32>
    %cst_7 = arith.constant 0.000000e+00 : f32
    %10 = vector.broadcast %cst_7 : f32 to vector<16x64xf32>
    %11 = arith.cmpf oge, %9, %10 : vector<16x64xf32>
    %cst_8 = arith.constant 1.000000e+00 : f32
    %cst_9 = arith.constant -1.000000e+00 : f32
    %12 = vector.broadcast %cst_8 : f32 to vector<16x64xf32>
    %13 = vector.broadcast %cst_9 : f32 to vector<16x64xf32>
    %14 = arith.select %11, %12, %13 : vector<16x64xi1>, vector<16x64xf32>
    %15 = math.absf %9 : vector<16x64xf32>
    %cst_10 = arith.constant 0.327591091 : f32
    %16 = vector.broadcast %cst_10 : f32 to vector<16x64xf32>
    %17 = arith.mulf %16, %15 : vector<16x64xf32>
    %cst_11 = arith.constant 1.000000e+00 : f32
    %18 = vector.broadcast %cst_11 : f32 to vector<16x64xf32>
    %19 = arith.addf %18, %17 : vector<16x64xf32>
    %20 = tpu.reciprocal %19 {approx = true} : vector<16x64xf32> -> vector<16x64xf32>
    %cst_12 = arith.constant 1.06140542 : f32
    %21 = vector.broadcast %cst_12 : f32 to vector<16x64xf32>
    %22 = arith.mulf %21, %20 : vector<16x64xf32>
    %cst_13 = arith.constant -1.45315206 : f32
    %23 = vector.broadcast %cst_13 : f32 to vector<16x64xf32>
    %24 = arith.addf %22, %23 : vector<16x64xf32>
    %25 = arith.mulf %24, %20 : vector<16x64xf32>
    %cst_14 = arith.constant 1.42141378 : f32
    %26 = vector.broadcast %cst_14 : f32 to vector<16x64xf32>
    %27 = arith.addf %25, %26 : vector<16x64xf32>
    %28 = arith.mulf %27, %20 : vector<16x64xf32>
    %cst_15 = arith.constant -0.284496725 : f32
    %29 = vector.broadcast %cst_15 : f32 to vector<16x64xf32>
    %30 = arith.addf %28, %29 : vector<16x64xf32>
    %31 = arith.mulf %30, %20 : vector<16x64xf32>
    %cst_16 = arith.constant 0.254829586 : f32
    %32 = vector.broadcast %cst_16 : f32 to vector<16x64xf32>
    %33 = arith.addf %31, %32 : vector<16x64xf32>
    %34 = arith.mulf %33, %20 : vector<16x64xf32>
    %cst_17 = arith.constant 0.000000e+00 : f32
    %35 = vector.broadcast %cst_17 : f32 to vector<16x64xf32>
    %36 = arith.subf %35, %15 : vector<16x64xf32>
    %37 = arith.mulf %36, %15 : vector<16x64xf32>
    %38 = math.exp %37 : vector<16x64xf32>
    %39 = arith.mulf %34, %38 : vector<16x64xf32>
    %cst_18 = arith.constant 1.000000e+00 : f32
    %40 = vector.broadcast %cst_18 : f32 to vector<16x64xf32>
    %41 = arith.subf %40, %39 : vector<16x64xf32>
    %42 = arith.mulf %14, %41 : vector<16x64xf32>
    %cst_19 = arith.constant 1.000000e+00 : f32
    %43 = vector.broadcast %cst_19 : f32 to vector<16x64xf32>
    %44 = arith.addf %43, %42 : vector<16x64xf32>
    %45 = arith.mulf %7, %44 : vector<16x64xf32>
    %46 = arith.truncf %45 : vector<16x64xf32> to vector<16x64xbf16>
    %c0_20 = arith.constant 0 : index
    %c0_21 = arith.constant 0 : index
    %47 = vector.load %arg4[%c0_20, %c0_21] : memref<64x32xbf16, #tpu.memory_space<vmem>>, vector<64x32xbf16>
    %cst_22 = arith.constant dense<0.000000e+00> : vector<16x32xf32>
    %48 = tpu.matmul %46, %47, %cst_22 {dimension_numbers = #tpu.dot_dimension_numbers<[1], [0], [0], [1], [0, 0, 1, 1], [], []>} : vector<16x64xbf16>, vector<64x32xbf16>, vector<16x32xf32> -> vector<16x32xf32>
    %c0_23 = arith.constant 0 : index
    %c0_24 = arith.constant 0 : index
    %49 = vector.load %arg5[%c0_23, %c0_24] : memref<1x32xf32, #tpu.memory_space<vmem>>, vector<1x32xf32>
    %50 = vector.broadcast %49 : vector<1x32xf32> to vector<16x32xf32>
    %51 = arith.addf %48, %50 : vector<16x32xf32>
    %52 = arith.truncf %51 : vector<16x32xf32> to vector<16x32xbf16>
    %c0_25 = arith.constant 0 : index
    %c0_26 = arith.constant 0 : index
    %53 = vector.load %arg6[%c0_25, %c0_26] : memref<32x32xbf16, #tpu.memory_space<vmem>>, vector<32x32xbf16>
    %cst_27 = arith.constant dense<0.000000e+00> : vector<16x32xf32>
    %54 = tpu.matmul %52, %53, %cst_27 {dimension_numbers = #tpu.dot_dimension_numbers<[1], [0], [0], [1], [0, 0, 1, 1], [], []>} : vector<16x32xbf16>, vector<32x32xbf16>, vector<16x32xf32> -> vector<16x32xf32>
    %cst_28 = arith.constant dense<0xFF800000> : vector<16xf32>
    %55 = vector.multi_reduction <maximumf>, %54, %cst_28 [1] : vector<16x32xf32> to vector<16xf32>
    %56 = vector.shape_cast %55 : vector<16xf32> to vector<16x1xf32>
    %57 = vector.broadcast %56 : vector<16x1xf32> to vector<16x32xf32>
    %58 = arith.subf %54, %57 : vector<16x32xf32>
    %59 = math.exp %58 : vector<16x32xf32>
    %60 = arith.truncf %59 : vector<16x32xf32> to vector<16x32xbf16>
    %c0_29 = arith.constant 0 : index
    %c0_30 = arith.constant 0 : index
    %61 = vector.load %arg7[%c0_29, %c0_30] : memref<32x32xbf16, #tpu.memory_space<vmem>>, vector<32x32xbf16>
    %cst_31 = arith.constant dense<0.000000e+00> : vector<16x32xf32>
    %62 = tpu.matmul %60, %61, %cst_31 {dimension_numbers = #tpu.dot_dimension_numbers<[1], [0], [0], [1], [0, 0, 1, 1], [], []>} : vector<16x32xbf16>, vector<32x32xbf16>, vector<16x32xf32> -> vector<16x32xf32>
    %63 = tpu.reciprocal %62 {approx = true} : vector<16x32xf32> -> vector<16x32xf32>
    %64 = arith.mulf %59, %63 : vector<16x32xf32>
    %65 = vector.shape_cast %64 : vector<16x32xf32> to vector<2x8x32xf32>
    %cst_32 = arith.constant dense<0.000000e+00> : vector<2x32xf32>
    %66 = vector.multi_reduction <add>, %65, %cst_32 [1] : vector<2x8x32xf32> to vector<2x32xf32>
    %67 = arith.truncf %66 : vector<2x32xf32> to vector<2x32xbf16>
    %c0_33 = arith.constant 0 : index
    %c0_34 = arith.constant 0 : index
    %68 = vector.load %arg8[%c0_33, %c0_34] : memref<32x32xbf16, #tpu.memory_space<vmem>>, vector<32x32xbf16>
    %cst_35 = arith.constant dense<0.000000e+00> : vector<2x32xf32>
    %69 = tpu.matmul %67, %68, %cst_35 {dimension_numbers = #tpu.dot_dimension_numbers<[1], [0], [0], [1], [0, 0, 1, 1], [], []>} : vector<2x32xbf16>, vector<32x32xbf16>, vector<2x32xf32> -> vector<2x32xf32>
    %70 = arith.truncf %69 : vector<2x32xf32> to vector<2x32xbf16>
    %c0_36 = arith.constant 0 : index
    %c0_37 = arith.constant 0 : index
    %71 = vector.load %arg9[%c0_36, %c0_37] : memref<32x64xbf16, #tpu.memory_space<vmem>>, vector<32x64xbf16>
    %cst_38 = arith.constant dense<0.000000e+00> : vector<2x64xf32>
    %72 = tpu.matmul %70, %71, %cst_38 {dimension_numbers = #tpu.dot_dimension_numbers<[1], [0], [0], [1], [0, 0, 1, 1], [], []>} : vector<2x32xbf16>, vector<32x64xbf16>, vector<2x64xf32> -> vector<2x64xf32>
    %c0_39 = arith.constant 0 : index
    %c0_40 = arith.constant 0 : index
    %73 = vector.load %arg10[%c0_39, %c0_40] : memref<1x64xf32, #tpu.memory_space<vmem>>, vector<1x64xf32>
    %74 = vector.broadcast %73 : vector<1x64xf32> to vector<2x64xf32>
    %75 = arith.addf %72, %74 : vector<2x64xf32>
    %cst_41 = arith.constant 5.000000e-01 : f32
    %76 = vector.broadcast %cst_41 : f32 to vector<2x64xf32>
    %77 = arith.mulf %76, %75 : vector<2x64xf32>
    %cst_42 = arith.constant 0.707106769 : f32
    %78 = vector.broadcast %cst_42 : f32 to vector<2x64xf32>
    %79 = arith.mulf %75, %78 : vector<2x64xf32>
    %cst_43 = arith.constant 0.000000e+00 : f32
    %80 = vector.broadcast %cst_43 : f32 to vector<2x64xf32>
    %81 = arith.cmpf oge, %79, %80 : vector<2x64xf32>
    %cst_44 = arith.constant 1.000000e+00 : f32
    %cst_45 = arith.constant -1.000000e+00 : f32
    %82 = vector.broadcast %cst_44 : f32 to vector<2x64xf32>
    %83 = vector.broadcast %cst_45 : f32 to vector<2x64xf32>
    %84 = arith.select %81, %82, %83 : vector<2x64xi1>, vector<2x64xf32>
    %85 = math.absf %79 : vector<2x64xf32>
    %cst_46 = arith.constant 0.327591091 : f32
    %86 = vector.broadcast %cst_46 : f32 to vector<2x64xf32>
    %87 = arith.mulf %86, %85 : vector<2x64xf32>
    %cst_47 = arith.constant 1.000000e+00 : f32
    %88 = vector.broadcast %cst_47 : f32 to vector<2x64xf32>
    %89 = arith.addf %88, %87 : vector<2x64xf32>
    %90 = tpu.reciprocal %89 {approx = true} : vector<2x64xf32> -> vector<2x64xf32>
    %cst_48 = arith.constant 1.06140542 : f32
    %91 = vector.broadcast %cst_48 : f32 to vector<2x64xf32>
    %92 = arith.mulf %91, %90 : vector<2x64xf32>
    %cst_49 = arith.constant -1.45315206 : f32
    %93 = vector.broadcast %cst_49 : f32 to vector<2x64xf32>
    %94 = arith.addf %92, %93 : vector<2x64xf32>
    %95 = arith.mulf %94, %90 : vector<2x64xf32>
    %cst_50 = arith.constant 1.42141378 : f32
    %96 = vector.broadcast %cst_50 : f32 to vector<2x64xf32>
    %97 = arith.addf %95, %96 : vector<2x64xf32>
    %98 = arith.mulf %97, %90 : vector<2x64xf32>
    %cst_51 = arith.constant -0.284496725 : f32
    %99 = vector.broadcast %cst_51 : f32 to vector<2x64xf32>
    %100 = arith.addf %98, %99 : vector<2x64xf32>
    %101 = arith.mulf %100, %90 : vector<2x64xf32>
    %cst_52 = arith.constant 0.254829586 : f32
    %102 = vector.broadcast %cst_52 : f32 to vector<2x64xf32>
    %103 = arith.addf %101, %102 : vector<2x64xf32>
    %104 = arith.mulf %103, %90 : vector<2x64xf32>
    %cst_53 = arith.constant 0.000000e+00 : f32
    %105 = vector.broadcast %cst_53 : f32 to vector<2x64xf32>
    %106 = arith.subf %105, %85 : vector<2x64xf32>
    %107 = arith.mulf %106, %85 : vector<2x64xf32>
    %108 = math.exp %107 : vector<2x64xf32>
    %109 = arith.mulf %104, %108 : vector<2x64xf32>
    %cst_54 = arith.constant 1.000000e+00 : f32
    %110 = vector.broadcast %cst_54 : f32 to vector<2x64xf32>
    %111 = arith.subf %110, %109 : vector<2x64xf32>
    %112 = arith.mulf %84, %111 : vector<2x64xf32>
    %cst_55 = arith.constant 1.000000e+00 : f32
    %113 = vector.broadcast %cst_55 : f32 to vector<2x64xf32>
    %114 = arith.addf %113, %112 : vector<2x64xf32>
    %115 = arith.mulf %77, %114 : vector<2x64xf32>
    %116 = arith.truncf %115 : vector<2x64xf32> to vector<2x64xbf16>
    %c0_56 = arith.constant 0 : index
    %c0_57 = arith.constant 0 : index
    %117 = vector.load %arg11[%c0_56, %c0_57] : memref<64x128xbf16, #tpu.memory_space<vmem>>, vector<64x128xbf16>
    %cst_58 = arith.constant dense<0.000000e+00> : vector<2x128xf32>
    %118 = tpu.matmul %116, %117, %cst_58 {dimension_numbers = #tpu.dot_dimension_numbers<[1], [0], [0], [1], [0, 0, 1, 1], [], []>} : vector<2x64xbf16>, vector<64x128xbf16>, vector<2x128xf32> -> vector<2x128xf32>
    %c0_59 = arith.constant 0 : index
    %c0_60 = arith.constant 0 : index
    %119 = vector.load %arg12[%c0_59, %c0_60] : memref<1x128xf32, #tpu.memory_space<vmem>>, vector<1x128xf32>
    %120 = vector.broadcast %119 : vector<1x128xf32> to vector<2x128xf32>
    %121 = arith.addf %118, %120 : vector<2x128xf32>
    %cst_61 = arith.constant dense<0xFF800000> : vector<2xf32>
    %122 = vector.multi_reduction <maximumf>, %121, %cst_61 [1] : vector<2x128xf32> to vector<2xf32>
    %123 = vector.shape_cast %122 : vector<2xf32> to vector<2x1xf32>
    %124 = vector.broadcast %123 : vector<2x1xf32> to vector<2x128xf32>
    %125 = arith.subf %121, %124 : vector<2x128xf32>
    %126 = math.exp %125 : vector<2x128xf32>
    %cst_62 = arith.constant dense<0.000000e+00> : vector<2xf32>
    %127 = vector.multi_reduction <add>, %126, %cst_62 [1] : vector<2x128xf32> to vector<2xf32>
    %128 = vector.shape_cast %127 : vector<2xf32> to vector<2x1xf32>
    %129 = tpu.reciprocal %128 {approx = true} : vector<2x1xf32> -> vector<2x1xf32>
    %130 = vector.broadcast %129 : vector<2x1xf32> to vector<2x128xf32>
    %131 = arith.mulf %126, %130 : vector<2x128xf32>
    %c0_63 = arith.constant 0 : index
    %c0_64 = arith.constant 0 : index
    %132 = vector.load %arg13[%c0_63, %c0_64] : memref<2x128xf32, #tpu.memory_space<vmem>>, vector<2x128xf32>
    tpu.vector_store %arg13[%c0_63, %c0_64], %131 {strides = array<i32>} : memref<2x128xf32, #tpu.memory_space<vmem>>, vector<2x128xf32>,
    return
  }
  func.func @transform_0(%arg0: i32) -> (i32, i32) {
    %c0_i32 = arith.constant 0 : i32
    %c0_i32_0 = arith.constant 0 : i32
    return %arg0, %c0_i32 : i32, i32
  }
  func.func @transform_1(%arg0: i32) -> (i32, i32) {
    %c0_i32 = arith.constant 0 : i32
    %c0_i32_0 = arith.constant 0 : i32
    %c0_i32_1 = arith.constant 0 : i32
    return %c0_i32, %c0_i32_0 : i32, i32
  }
  func.func @transform_2(%arg0: i32) -> (i32, i32) {
    %c0_i32 = arith.constant 0 : i32
    %c0_i32_0 = arith.constant 0 : i32
    %c0_i32_1 = arith.constant 0 : i32
    return %c0_i32, %c0_i32_0 : i32, i32
  }
  func.func @transform_3(%arg0: i32) -> (i32, i32) {
    %c0_i32 = arith.constant 0 : i32
    %c0_i32_0 = arith.constant 0 : i32
    %c0_i32_1 = arith.constant 0 : i32
    return %c0_i32, %c0_i32_0 : i32, i32
  }
  func.func @transform_4(%arg0: i32) -> (i32, i32) {
    %c0_i32 = arith.constant 0 : i32
    %c0_i32_0 = arith.constant 0 : i32
    %c0_i32_1 = arith.constant 0 : i32
    return %c0_i32, %c0_i32_0 : i32, i32
  }
  func.func @transform_5(%arg0: i32) -> (i32, i32) {
    %c0_i32 = arith.constant 0 : i32
    %c0_i32_0 = arith.constant 0 : i32
    %c0_i32_1 = arith.constant 0 : i32
    return %c0_i32, %c0_i32_0 : i32, i32
  }
  func.func @transform_6(%arg0: i32) -> (i32, i32) {
    %c0_i32 = arith.constant 0 : i32
    %c0_i32_0 = arith.constant 0 : i32
    %c0_i32_1 = arith.constant 0 : i32
    return %c0_i32, %c0_i32_0 : i32, i32
  }
  func.func @transform_7(%arg0: i32) -> (i32, i32) {
    %c0_i32 = arith.constant 0 : i32
    %c0_i32_0 = arith.constant 0 : i32
    %c0_i32_1 = arith.constant 0 : i32
    return %c0_i32, %c0_i32_0 : i32, i32
  }
  func.func @transform_8(%arg0: i32) -> (i32, i32) {
    %c0_i32 = arith.constant 0 : i32
    %c0_i32_0 = arith.constant 0 : i32
    %c0_i32_1 = arith.constant 0 : i32
    return %c0_i32, %c0_i32_0 : i32, i32
  }
  func.func @transform_9(%arg0: i32) -> (i32, i32) {
    %c0_i32 = arith.constant 0 : i32
    %c0_i32_0 = arith.constant 0 : i32
    %c0_i32_1 = arith.constant 0 : i32
    return %c0_i32, %c0_i32_0 : i32, i32
  }
  func.func @transform_10(%arg0: i32) -> (i32, i32) {
    %c0_i32 = arith.constant 0 : i32
    %c0_i32_0 = arith.constant 0 : i32
    %c0_i32_1 = arith.constant 0 : i32
    return %c0_i32, %c0_i32_0 : i32, i32
  }
  func.func @transform_11(%arg0: i32) -> (i32, i32) {
    %c0_i32 = arith.constant 0 : i32
    %c0_i32_0 = arith.constant 0 : i32
    %c0_i32_1 = arith.constant 0 : i32
    return %c0_i32, %c0_i32_0 : i32, i32
  }
  func.func @transform_12(%arg0: i32) -> (i32, i32) {
    %c0_i32 = arith.constant 0 : i32
    %c0_i32_0 = arith.constant 0 : i32
    return %arg0, %c0_i32 : i32, i32
  }
}

</mosaic_0001>

<llo_original>
// kernel: tpu_custom_call.1
$region0: #{tpu_custom_call.1}
  #allocation0 [shape = 'u32[]', space=smem, size = 0x4, offset = 0x4, fixed_abs, tag = 'smem constant byte address 0x4 - core index']
  #allocation1 [shape = 'u32[144,128]{1,0:T(1,128)}', space=vmem, size = 0x12000, scoped, tag = 'internal scratch']
  %s0 = inlined_call_operand.hbm [shape: bf16[16,32], index: 0, kind: input, shape index: {}]
  %s1 = inlined_call_operand.vmem [shape: bf16[32,64], index: 1, kind: input, shape index: {}]
  %s2 = inlined_call_operand.hbm [shape: f32[1,64], index: 2, kind: input, shape index: {}]
  %s3 = inlined_call_operand.vmem [shape: bf16[64,32], index: 3, kind: input, shape index: {}]
  %s4 = inlined_call_operand.hbm [shape: f32[1,32], index: 4, kind: input, shape index: {}]
  %s5 = inlined_call_operand.vmem [shape: bf16[32,32], index: 5, kind: input, shape index: {}]
  %s6 = inlined_call_operand.hbm [shape: bf16[32,32], index: 6, kind: input, shape index: {}]
  %s7 = inlined_call_operand.hbm [shape: bf16[32,32], index: 7, kind: input, shape index: {}]
  %s8 = inlined_call_operand.hbm [shape: bf16[32,64], index: 8, kind: input, shape index: {}]
  %s9 = inlined_call_operand.hbm [shape: f32[1,64], index: 9, kind: input, shape index: {}]
  %s10 = inlined_call_operand.vmem [shape: bf16[64,128], index: 10, kind: input, shape index: {}]
  %s11 = inlined_call_operand.vmem [shape: f32[1,128], index: 11, kind: input, shape index: {}]
  %s12 = inlined_call_operand.hbm [shape: f32[2,128], index: 12, kind: output, shape index: {}]
  %s13 = sld [smem:[#allocation0]]
  $region86: #{tpu_custom_call.1} parent=0
    _
  %s15 = ssub.s32 1, %s13
  %s16 = scalar_select 0, %s15, %s13
  $region1: #{tpu_custom_call.1} parent=0
    #allocation2 [shape = 'u8[4096]{0}', space=vmem, size = 0x1000, scoped, tag = 'input window, operand 0, single buffered']
    #allocation3 [shape = 's32[1]{0}', space=sflag, size = 0x4, scoped, tag = 'scoped memory for tpu_custom_call.1']
    #allocation4 [shape = 's32[1]{0}', space=sflag, size = 0x4, scoped, tag = 'scoped memory for tpu_custom_call.1']
    #allocation5 [shape = 'u8[512]{0}', space=vmem, size = 0x400, scoped, tag = 'input window, operand 2, single buffered']
    #allocation6 [shape = 's32[1]{0}', space=sflag, size = 0x4, scoped, tag = 'scoped memory for tpu_custom_call.1']
    #allocation7 [shape = 'u8[512]{0}', space=vmem, size = 0x400, scoped, tag = 'input window, operand 4, single buffered']
    #allocation8 [shape = 'u8[8192]{0}', space=vmem, size = 0x2000, scoped, tag = 'input window, operand 6, single buffered']
    #allocation9 [shape = 's32[1]{0}', space=sflag, size = 0x4, scoped, tag = 'scoped memory for tpu_custom_call.1']
    #allocation10 [shape = 'u8[8192]{0}', space=vmem, size = 0x2000, scoped, tag = 'input window, operand 7, single buffered']
    #allocation11 [shape = 'u8[8192]{0}', space=vmem, size = 0x2000, scoped, tag = 'input window, operand 8, single buffered']
    #allocation12 [shape = 's32[1]{0}', space=sflag, size = 0x4, scoped, tag = 'scoped memory for tpu_custom_call.1']
    #allocation13 [shape = 'u8[512]{0}', space=vmem, size = 0x400, scoped, tag = 'input window, operand 9, single buffered']
    #allocation14 [shape = 'u8[1024]{0}', space=vmem, size = 0x400, scoped, tag = 'output window, operand 0, single buffered']
    %17 = vsyncpa [#allocation3], 0
    %18 = vsyncpa [#allocation6], 0
    %19 = vsyncpa [#allocation9], 0
    %20 = vsyncpa [#allocation12], 0
    %21 = vsyncpa [#allocation4], 0
    // Predicated region
    $region2: #{tpu_custom_call.1} parent=1 // pred_check
      _
    $region3: #{tpu_custom_call.1} parent=1 // pred_check_branch
      %23 = sbr.rel (0) target = $region5
    $region4: #{tpu_custom_call.1} parent=1 // pred_region
      %s25 = ssub.s32 128, 128
      %26 = vsyncadd [#allocation3], %s25
      %s27 = sshll.u32 [#allocation2], 4
      %s28 = int_to_ptr.vmem [resolvable:$true] %s27
      %33 = dma.hbm_to_vmem [thread:$0]  %s0, 128, %s28, [#allocation3], 64, 64, 4
    $region5: #{tpu_custom_call.1} parent=1 // pred_fallthru
      _
    // Predicated region
    $region6: #{tpu_custom_call.1} parent=1 // pred_check
      _
    $region7: #{tpu_custom_call.1} parent=1 // pred_check_branch
      %35 = sbr.rel (0) target = $region9
    $region8: #{tpu_custom_call.1} parent=1 // pred_region
      _
    $region9: #{tpu_custom_call.1} parent=1 // pred_fallthru
      _
    // Predicated region
    $region10: #{tpu_custom_call.1} parent=1 // pred_check
      _
    $region11: #{tpu_custom_call.1} parent=1 // pred_check_branch
      %37 = sbr.rel (0) target = $region13
    $region12: #{tpu_custom_call.1} parent=1 // pred_region
      %s39 = ssub.s32 16, 16
      %40 = vsyncadd [#allocation6], %s39
      %s42 = sshll.u32 [#allocation5], 4
      %s43 = int_to_ptr.vmem [resolvable:$true] %s42
      %45 = dma.hbm_to_vmem [thread:$0]  %s2, 16, %s43, [#allocation6]
    $region13: #{tpu_custom_call.1} parent=1 // pred_fallthru
      _
    // Predicated region
    $region14: #{tpu_custom_call.1} parent=1 // pred_check
      _
    $region15: #{tpu_custom_call.1} parent=1 // pred_check_branch
      %47 = sbr.rel (0) target = $region17
    $region16: #{tpu_custom_call.1} parent=1 // pred_region
      _
    $region17: #{tpu_custom_call.1} parent=1 // pred_fallthru
      _
    // Predicated region
    $region18: #{tpu_custom_call.1} parent=1 // pred_check
      _
    $region19: #{tpu_custom_call.1} parent=1 // pred_check_branch
      %49 = sbr.rel (0) target = $region21
    $region20: #{tpu_custom_call.1} parent=1 // pred_region
      %s51 = ssub.s32 16, 16
      %52 = vsyncadd [#allocation6], %s51
      %s54 = sshll.u32 [#allocation7], 4
      %s55 = int_to_ptr.vmem [resolvable:$true] %s54
      %57 = dma.hbm_to_vmem [thread:$0]  %s4, 16, %s55, [#allocation6]
    $region21: #{tpu_custom_call.1} parent=1 // pred_fallthru
      _
    // Predicated region
    $region22: #{tpu_custom_call.1} parent=1 // pred_check
      _
    $region23: #{tpu_custom_call.1} parent=1 // pred_check_branch
      %59 = sbr.rel (0) target = $region25
    $region24: #{tpu_custom_call.1} parent=1 // pred_region
      _
    $region25: #{tpu_custom_call.1} parent=1 // pred_fallthru
      _
    // Predicated region
    $region26: #{tpu_custom_call.1} parent=1 // pred_check
      _
    $region27: #{tpu_custom_call.1} parent=1 // pred_check_branch
      %61 = sbr.rel (0) target = $region29
    $region28: #{tpu_custom_call.1} parent=1 // pred_region
      %s63 = ssub.s32 256, 256
      %64 = vsyncadd [#allocation9], %s63
      %s65 = sshll.u32 [#allocation8], 4
      %s66 = int_to_ptr.vmem [resolvable:$true] %s65
      %71 = dma.hbm_to_vmem [thread:$0]  %s6, 256, %s66, [#allocation9], 64, 64, 4
    $region29: #{tpu_custom_call.1} parent=1 // pred_fallthru
      _
    // Predicated region
    $region30: #{tpu_custom_call.1} parent=1 // pred_check
      _
    $region31: #{tpu_custom_call.1} parent=1 // pred_check_branch
      %73 = sbr.rel (0) target = $region33
    $region32: #{tpu_custom_call.1} parent=1 // pred_region
      %s75 = ssub.s32 256, 256
      %76 = vsyncadd [#allocation9], %s75
      %s77 = sshll.u32 [#allocation10], 4
      %s78 = int_to_ptr.vmem [resolvable:$true] %s77
      %83 = dma.hbm_to_vmem [thread:$0]  %s7, 256, %s78, [#allocation9], 64, 64, 4
    $region33: #{tpu_custom_call.1} parent=1 // pred_fallthru
      _
    // Predicated region
    $region34: #{tpu_custom_call.1} parent=1 // pred_check
      _
    $region35: #{tpu_custom_call.1} parent=1 // pred_check_branch
      %85 = sbr.rel (0) target = $region37
    $region36: #{tpu_custom_call.1} parent=1 // pred_region
      %s87 = ssub.s32 256, 256
      %88 = vsyncadd [#allocation12], %s87
      %s89 = sshll.u32 [#allocation11], 4
      %s90 = int_to_ptr.vmem [resolvable:$true] %s89
      %95 = dma.hbm_to_vmem [thread:$0]  %s8, 256, %s90, [#allocation12], 64, 64, 4
    $region37: #{tpu_custom_call.1} parent=1 // pred_fallthru
      _
    // Predicated region
    $region38: #{tpu_custom_call.1} parent=1 // pred_check
      _
    $region39: #{tpu_custom_call.1} parent=1 // pred_check_branch
      %97 = sbr.rel (0) target = $region41
    $region40: #{tpu_custom_call.1} parent=1 // pred_region
      %s99 = ssub.s32 16, 16
      %100 = vsyncadd [#allocation12], %s99
      %s102 = sshll.u32 [#allocation13], 4
      %s103 = int_to_ptr.vmem [resolvable:$true] %s102
      %105 = dma.hbm_to_vmem [thread:$0]  %s9, 16, %s103, [#allocation12]
    $region41: #{tpu_custom_call.1} parent=1 // pred_fallthru
      _
    // Predicated region
    $region42: #{tpu_custom_call.1} parent=1 // pred_check
      _
    $region43: #{tpu_custom_call.1} parent=1 // pred_check_branch
      %107 = sbr.rel (0) target = $region45
    $region44: #{tpu_custom_call.1} parent=1 // pred_region
      _
    $region45: #{tpu_custom_call.1} parent=1 // pred_fallthru
      _
    // Predicated region
    $region46: #{tpu_custom_call.1} parent=1 // pred_check
      _
    $region47: #{tpu_custom_call.1} parent=1 // pred_check_branch
      %109 = sbr.rel (0) target = $region49
    $region48: #{tpu_custom_call.1} parent=1 // pred_region
      _
    $region49: #{tpu_custom_call.1} parent=1 // pred_fallthru
      _
    // Predicated region
    $region50: #{tpu_custom_call.1} parent=1 // pred_check
      _
    $region51: #{tpu_custom_call.1} parent=1 // pred_check_branch
      %111 = sbr.rel (0) target = $region53
    $region52: #{tpu_custom_call.1} parent=1 // pred_region
      %112 = dma.done [#allocation3], 128
    $region53: #{tpu_custom_call.1} parent=1 // pred_fallthru
      _
    // Predicated region
    $region54: #{tpu_custom_call.1} parent=1 // pred_check
      _
    $region55: #{tpu_custom_call.1} parent=1 // pred_check_branch
      %114 = sbr.rel (0) target = $region57
    $region56: #{tpu_custom_call.1} parent=1 // pred_region
      %115 = dma.done [#allocation6], 16
    $region57: #{tpu_custom_call.1} parent=1 // pred_fallthru
      _
    // Predicated region
    $region58: #{tpu_custom_call.1} parent=1 // pred_check
      _
    $region59: #{tpu_custom_call.1} parent=1 // pred_check_branch
      %117 = sbr.rel (0) target = $region61
    $region60: #{tpu_custom_call.1} parent=1 // pred_region
      %118 = dma.done [#allocation6], 16
    $region61: #{tpu_custom_call.1} parent=1 // pred_fallthru
      _
    // Predicated region
    $region62: #{tpu_custom_call.1} parent=1 // pred_check
      _
    $region63: #{tpu_custom_call.1} parent=1 // pred_check_branch
      %120 = sbr.rel (0) target = $region65
    $region64: #{tpu_custom_call.1} parent=1 // pred_region
      %121 = dma.done [#allocation9], 256
    $region65: #{tpu_custom_call.1} parent=1 // pred_fallthru
      _
    // Predicated region
    $region66: #{tpu_custom_call.1} parent=1 // pred_check
      _
    $region67: #{tpu_custom_call.1} parent=1 // pred_check_branch
      %123 = sbr.rel (0) target = $region69
    $region68: #{tpu_custom_call.1} parent=1 // pred_region
      %124 = dma.done [#allocation9], 256
    $region69: #{tpu_custom_call.1} parent=1 // pred_fallthru
      _
    // Predicated region
    $region70: #{tpu_custom_call.1} parent=1 // pred_check
      _
    $region71: #{tpu_custom_call.1} parent=1 // pred_check_branch
      %126 = sbr.rel (0) target = $region73
    $region72: #{tpu_custom_call.1} parent=1 // pred_region
      %127 = dma.done [#allocation12], 256
    $region73: #{tpu_custom_call.1} parent=1 // pred_fallthru
      _
    // Predicated region
    $region74: #{tpu_custom_call.1} parent=1 // pred_check
      _
    $region75: #{tpu_custom_call.1} parent=1 // pred_check_branch
      %129 = sbr.rel (0) target = $region77
    $region76: #{tpu_custom_call.1} parent=1 // pred_region
      %130 = dma.done [#allocation12], 16
    $region77: #{tpu_custom_call.1} parent=1 // pred_fallthru
      _
    %v132 = vld [vmem:[#allocation2] sm:$0xf]
    %v133 = vld [vmem:[#allocation2 + $0x4] sm:$0xf]
    %v134 = vld [vmem:[%s1] sm:$0xf]
    %v135 = vld [vmem:[%s1 + $0x4] sm:$0xf]
    %v136 = vld [vmem:[%s1 + $0x8] sm:$0xf]
    %v137 = vld [vmem:[%s1 + $0xc] sm:$0xf]
    %v138 = vld [vmem:[#allocation5] sm:$0x1]
    %v140 = vlaneseq
    %v141 = vshrl.u32 %v140, 7
    %v142 = vsub.s32 0, %v141
    %v143 = vrot.slane %v138, %v142
    %v147 = vunpack.c.l.b16 %v132
    %v148 = vunpack.c.l.b16 %v133
    %v149 = vpack.c.b16 %v148, %v147
    %v154 = vunpack.c.l.b16 %v134
    %v155 = vunpack.c.l.b16 %v135
    %v156 = vunpack.c.l.b16 %v136
    %v157 = vunpack.c.l.b16 %v137
    %v158 = vpack.c.b16 %v155, %v154
    %v159 = vpack.c.b16 %v157, %v156
    %vm162 = vcmask 261120
    %v164 = vsel %vm162, %v149, 0
    %166 = vmatprep.subr.bf16.mxu0 0
    %167 = vmatpush1.bf16.msra.mxu0 0
    %168 = vmatprep.subr.bf16.mxu0 0
    %169 = vmatpush1.bf16.msra.mxu0 0
    %170 = vmatprep.subr.bf16.mxu0 0
    %171 = vmatpush1.bf16.msra.mxu0 0
    %172 = vmatprep.subr.bf16.mxu0 0
    %173 = vmatpush1.bf16.msra.mxu0 0
    %174 = vmatprep.subr.bf16.mxu0 0
    %175 = vmatpush1.bf16.msra.mxu0 0
    %176 = vmatprep.subr.bf16.mxu0 0
    %177 = vmatpush1.bf16.msra.mxu0 0
    %178 = vmatprep.subr.bf16.mxu0 0
    %179 = vmatpush1.bf16.msra.mxu0 %v159
    %180 = vmatprep.subr.bf16.mxu0 0
    %181 = vmatpush1.bf16.msra.mxu0 %v158
    %182 = vmatprep.subr.bf16.mxu0 0
    %183 = vmatpush2.bf16.msra.mxu0 0
    %184 = vmatprep.subr.bf16.mxu0 0
    %185 = vmatpush2.bf16.msra.mxu0 0
    %186 = vmatprep.subr.bf16.mxu0 0
    %187 = vmatpush2.bf16.msra.mxu0 0
    %188 = vmatprep.subr.bf16.mxu0 0
    %189 = vmatpush2.bf16.msra.mxu0 0
    %190 = vmatprep.subr.bf16.mxu0 0
    %191 = vmatpush2.bf16.msra.mxu0 0
    %192 = vmatprep.subr.bf16.mxu0 0
    %193 = vmatpush2.bf16.msra.mxu0 0
    %194 = vmatprep.subr.bf16.mxu0 0
    %195 = vmatpush2.bf16.msra.mxu0 0
    %196 = vmatprep.subr.bf16.mxu0 0
    %197 = vmatpush2.bf16.msra.mxu0 0
    %198 = vmatprep.mubr.bf16.mxu0 0
    %199 = vmatmul.mubr.bf16.gmra.mxu0 %v164
    %v200 = vpop.f32.mrf.mxu0
    %v201 = vadd.f32 %v143, %v200
    %v202 = vpop.f32.mrf.mxu0
    %v203 = vpop.f32.mrf.mxu0
    %v204 = vadd.f32 %v143, %v203
    %v205 = vpop.f32.mrf.mxu0
    %206 = vdwg.mxu0
    %v207 = vmul.f32 %v201, 0.5
    %v208 = vmul.f32 %v204, 0.5
    %v209 = vmul.f32 %v201, 0.70710677
    %v210 = vmul.f32 %v204, 0.70710677
    %vm211 = vcmp.ge.f32.partialorder %v209, 0.0
    %vm212 = vcmp.ge.f32.partialorder %v210, 0.0
    %v213 = vsel %vm211, 1.0, -1.0
    %v214 = vsel %vm212, 1.0, -1.0
    %v215 = vand.u32 2147483647, %v209
    %v216 = vand.u32 2147483647, %v210
    %v217 = vmul.f32 %v215, 0.3275911
    %v218 = vmul.f32 %v216, 0.3275911
    %v219 = vadd.f32 %v217, 1.0
    %v220 = vadd.f32 %v218, 1.0
    %v221 = vrcp.pop %v219
    %v222 = vrcp.pop %v220
    %v223 = vmul.f32 %v221, 1.0614054
    %v224 = vmul.f32 %v222, 1.0614054
    %v225 = vadd.f32 %v223, -1.4531521
    %v226 = vadd.f32 %v224, -1.4531521
    %v227 = vmul.f32 %v225, %v221
    %v228 = vmul.f32 %v226, %v222
    %v229 = vadd.f32 %v227, 1.4214138
    %v230 = vadd.f32 %v228, 1.4214138
    %v231 = vmul.f32 %v229, %v221
    %v232 = vmul.f32 %v230, %v222
    %v233 = vadd.f32 %v231, -0.28449672
    %v234 = vadd.f32 %v232, -0.28449672
    %v235 = vmul.f32 %v233, %v221
    %v236 = vmul.f32 %v234, %v222
    %v237 = vadd.f32 %v235, 0.2548296
    %v238 = vadd.f32 %v236, 0.2548296
    %v239 = vmul.f32 %v237, %v221
    %v240 = vmul.f32 %v238, %v222
    %v241 = vsub.f32 0.0, %v215
    %v242 = vsub.f32 0.0, %v216
    %v243 = vmul.f32 %v241, %v215
    %v244 = vmul.f32 %v242, %v216
    %v245 = vmul.f32 %v243, 1.442695
    %v246 = vpow.pop %v245
    %v247 = vmul.f32 %v244, 1.442695
    %v248 = vpow.pop %v247
    %v249 = vmul.f32 %v239, %v246
    %v250 = vmul.f32 %v240, %v248
    %v251 = vsub.f32 1.0, %v249
    %v252 = vsub.f32 1.0, %v250
    %v253 = vmul.f32 %v213, %v251
    %v254 = vmul.f32 %v214, %v252
    %v255 = vadd.f32 %v253, 1.0
    %v256 = vadd.f32 %v254, 1.0
    %v257 = vmul.f32 %v207, %v255
    %v258 = vmul.f32 %v208, %v256
    %v259 = vpack.c.bf16 %v258, %v257
    %v260 = vld [vmem:[%s3] sm:$0xf]
    %v261 = vld [vmem:[%s3 + $0x4] sm:$0xf]
    %v262 = vld [vmem:[%s3 + $0x8] sm:$0xf]
    %v263 = vld [vmem:[%s3 + $0xc] sm:$0xf]
    %v264 = vld [vmem:[%s3 + $0x10] sm:$0xf]
    %v265 = vld [vmem:[%s3 + $0x14] sm:$0xf]
    %v266 = vld [vmem:[%s3 + $0x18] sm:$0xf]
    %v267 = vld [vmem:[%s3 + $0x1c] sm:$0xf]
    %v268 = vld [vmem:[#allocation7] sm:$0x1]
    %v270 = vlaneseq
    %v271 = vshrl.u32 %v270, 7
    %v272 = vsub.s32 0, %v271
    %v273 = vrot.slane %v268, %v272
    %v283 = vunpack.c.l.b16 %v260
    %v284 = vunpack.c.l.b16 %v261
    %v285 = vunpack.c.l.b16 %v262
    %v286 = vunpack.c.l.b16 %v263
    %v287 = vunpack.c.l.b16 %v264
    %v288 = vunpack.c.l.b16 %v265
    %v289 = vunpack.c.l.b16 %v266
    %v290 = vunpack.c.l.b16 %v267
    %v291 = vpack.c.b16 %v284, %v283
    %v292 = vpack.c.b16 %v286, %v285
    %v293 = vpack.c.b16 %v288, %v287
    %v294 = vpack.c.b16 %v290, %v289
    %vm299 = vcmask 523264
    %v301 = vsel %vm299, %v259, 0
    %303 = vmatprep.subr.bf16.mxu0 0
    %304 = vmatpush1.bf16.msra.mxu0 0
    %305 = vmatprep.subr.bf16.mxu0 0
    %306 = vmatpush1.bf16.msra.mxu0 0
    %307 = vmatprep.subr.bf16.mxu0 0
    %308 = vmatpush1.bf16.msra.mxu0 0
    %309 = vmatprep.subr.bf16.mxu0 0
    %310 = vmatpush1.bf16.msra.mxu0 0
    %311 = vmatprep.subr.bf16.mxu0 0
    %312 = vmatpush1.bf16.msra.mxu0 %v294
    %313 = vmatprep.subr.bf16.mxu0 0
    %314 = vmatpush1.bf16.msra.mxu0 %v293
    %315 = vmatprep.subr.bf16.mxu0 0
    %316 = vmatpush1.bf16.msra.mxu0 %v292
    %317 = vmatprep.subr.bf16.mxu0 0
    %318 = vmatpush1.bf16.msra.mxu0 %v291
    %319 = vmatprep.subr.bf16.mxu0 0
    %320 = vmatpush2.bf16.msra.mxu0 0
    %321 = vmatprep.subr.bf16.mxu0 0
    %322 = vmatpush2.bf16.msra.mxu0 0
    %323 = vmatprep.subr.bf16.mxu0 0
    %324 = vmatpush2.bf16.msra.mxu0 0
    %325 = vmatprep.subr.bf16.mxu0 0
    %326 = vmatpush2.bf16.msra.mxu0 0
    %327 = vmatprep.subr.bf16.mxu0 0
    %328 = vmatpush2.bf16.msra.mxu0 0
    %329 = vmatprep.subr.bf16.mxu0 0
    %330 = vmatpush2.bf16.msra.mxu0 0
    %331 = vmatprep.subr.bf16.mxu0 0
    %332 = vmatpush2.bf16.msra.mxu0 0
    %333 = vmatprep.subr.bf16.mxu0 0
    %334 = vmatpush2.bf16.msra.mxu0 0
    %335 = vmatprep.mubr.bf16.mxu0 0
    %336 = vmatmul.mubr.bf16.gmra.mxu0 %v301
    %v337 = vpop.f32.mrf.mxu0
    %v338 = vadd.f32 %v273, %v337
    %v339 = vpop.f32.mrf.mxu0
    %v340 = vpop.f32.mrf.mxu0
    %v341 = vadd.f32 %v273, %v340
    %v342 = vpop.f32.mrf.mxu0
    %343 = vdwg.mxu0
    %v344 = vpack.c.bf16 %v341, %v338
    %v345 = vld [vmem:[%s5] sm:$0xf]
    %v346 = vld [vmem:[%s5 + $0x4] sm:$0xf]
    %v347 = vld [vmem:[%s5 + $0x8] sm:$0xf]
    %v348 = vld [vmem:[%s5 + $0xc] sm:$0xf]
    %v353 = vunpack.c.l.b16 %v345
    %v354 = vunpack.c.l.b16 %v346
    %v355 = vunpack.c.l.b16 %v347
    %v356 = vunpack.c.l.b16 %v348
    %v357 = vpack.c.b16 %v354, %v353
    %v358 = vpack.c.b16 %v356, %v355
    %v362 = vsel %vm162, %v344, 0
    %364 = vmatprep.subr.bf16.mxu0 0
    %365 = vmatpush1.bf16.msra.mxu0 0
    %366 = vmatprep.subr.bf16.mxu0 0
    %367 = vmatpush1.bf16.msra.mxu0 0
    %368 = vmatprep.subr.bf16.mxu0 0
    %369 = vmatpush1.bf16.msra.mxu0 0
    %370 = vmatprep.subr.bf16.mxu0 0
    %371 = vmatpush1.bf16.msra.mxu0 0
    %372 = vmatprep.subr.bf16.mxu0 0
    %373 = vmatpush1.bf16.msra.mxu0 0
    %374 = vmatprep.subr.bf16.mxu0 0
    %375 = vmatpush1.bf16.msra.mxu0 0
    %376 = vmatprep.subr.bf16.mxu0 0
    %377 = vmatpush1.bf16.msra.mxu0 %v358
    %378 = vmatprep.subr.bf16.mxu0 0
    %379 = vmatpush1.bf16.msra.mxu0 %v357
    %380 = vmatprep.subr.bf16.mxu0 0
    %381 = vmatpush2.bf16.msra.mxu0 0
    %382 = vmatprep.subr.bf16.mxu0 0
    %383 = vmatpush2.bf16.msra.mxu0 0
    %384 = vmatprep.subr.bf16.mxu0 0
    %385 = vmatpush2.bf16.msra.mxu0 0
    %386 = vmatprep.subr.bf16.mxu0 0
    %387 = vmatpush2.bf16.msra.mxu0 0
    %388 = vmatprep.subr.bf16.mxu0 0
    %389 = vmatpush2.bf16.msra.mxu0 0
    %390 = vmatprep.subr.bf16.mxu0 0
    %391 = vmatpush2.bf16.msra.mxu0 0
    %392 = vmatprep.subr.bf16.mxu0 0
    %393 = vmatpush2.bf16.msra.mxu0 0
    %394 = vmatprep.subr.bf16.mxu0 0
    %395 = vmatpush2.bf16.msra.mxu0 0
    %396 = vmatprep.mubr.bf16.mxu0 0
    %397 = vmatmul.mubr.bf16.gmra.mxu0 %v362
    %v398 = vpop.f32.mrf.mxu0
    %v399 = vadd.f32 0.0, %v398
    %v400 = vpop.f32.mrf.mxu0
    %v401 = vpop.f32.mrf.mxu0
    %v402 = vadd.f32 0.0, %v401
    %v403 = vpop.f32.mrf.mxu0
    %404 = vdwg.mxu0
    %v405 = vsel %vm162, %v399, -inf
    %406 = vmax.xlane.f32.xlu0 %v405
    %v407 = vpop.xlane.xlu0 %406
    %v408 = vsel %vm162, %v402, -inf
    %409 = vmax.xlane.f32.xlu0 %v408
    %v410 = vpop.xlane.xlu0 %409
    %v411 = vsub.f32 %v399, %v407
    %v412 = vsub.f32 %v402, %v410
    %v413 = vmul.f32 %v411, 1.442695
    %v414 = vpow.pop %v413
    %v415 = vmul.f32 %v412, 1.442695
    %v416 = vpow.pop %v415
    %v417 = vpack.c.bf16 %v416, %v414
    %v418 = vld [vmem:[#allocation8] sm:$0xf]
    %v419 = vld [vmem:[#allocation8 + $0x4] sm:$0xf]
    %v420 = vld [vmem:[#allocation8 + $0x8] sm:$0xf]
    %v421 = vld [vmem:[#allocation8 + $0xc] sm:$0xf]
    %v426 = vunpack.c.l.b16 %v418
    %v427 = vunpack.c.l.b16 %v419
    %v428 = vunpack.c.l.b16 %v420
    %v429 = vunpack.c.l.b16 %v421
    %v430 = vpack.c.b16 %v427, %v426
    %v431 = vpack.c.b16 %v429, %v428
    %v435 = vsel %vm162, %v417, 0
    %437 = vmatprep.subr.bf16.mxu0 0
    %438 = vmatpush1.bf16.msra.mxu0 0
    %439 = vmatprep.subr.bf16.mxu0 0
    %440 = vmatpush1.bf16.msra.mxu0 0
    %441 = vmatprep.subr.bf16.mxu0 0
    %442 = vmatpush1.bf16.msra.mxu0 0
    %443 = vmatprep.subr.bf16.mxu0 0
    %444 = vmatpush1.bf16.msra.mxu0 0
    %445 = vmatprep.subr.bf16.mxu0 0
    %446 = vmatpush1.bf16.msra.mxu0 0
    %447 = vmatprep.subr.bf16.mxu0 0
    %448 = vmatpush1.bf16.msra.mxu0 0
    %449 = vmatprep.subr.bf16.mxu0 0
    %450 = vmatpush1.bf16.msra.mxu0 %v431
    %451 = vmatprep.subr.bf16.mxu0 0
    %452 = vmatpush1.bf16.msra.mxu0 %v430
    %453 = vmatprep.subr.bf16.mxu0 0
    %454 = vmatpush2.bf16.msra.mxu0 0
    %455 = vmatprep.subr.bf16.mxu0 0
    %456 = vmatpush2.bf16.msra.mxu0 0
    %457 = vmatprep.subr.bf16.mxu0 0
    %458 = vmatpush2.bf16.msra.mxu0 0
    %459 = vmatprep.subr.bf16.mxu0 0
    %460 = vmatpush2.bf16.msra.mxu0 0
    %461 = vmatprep.subr.bf16.mxu0 0
    %462 = vmatpush2.bf16.msra.mxu0 0
    %463 = vmatprep.subr.bf16.mxu0 0
    %464 = vmatpush2.bf16.msra.mxu0 0
    %465 = vmatprep.subr.bf16.mxu0 0
    %466 = vmatpush2.bf16.msra.mxu0 0
    %467 = vmatprep.subr.bf16.mxu0 0
    %468 = vmatpush2.bf16.msra.mxu0 0
    %469 = vmatprep.mubr.bf16.mxu0 0
    %470 = vmatmul.mubr.bf16.gmra.mxu0 %v435
    %v471 = vpop.f32.mrf.mxu0
    %v472 = vadd.f32 0.0, %v471
    %v473 = vpop.f32.mrf.mxu0
    %v474 = vpop.f32.mrf.mxu0
    %v475 = vadd.f32 0.0, %v474
    %v476 = vpop.f32.mrf.mxu0
    %477 = vdwg.mxu0
    %v478 = vrcp.pop %v472
    %v479 = vrcp.pop %v475
    %v480 = vmul.f32 %v414, %v478
    %v481 = vmul.f32 %v416, %v479
    %v482 = vsel %vm162, %v480, 0.0
    %v483 = vrot.slane %v482, 4
    %v484 = vadd.f32 %v482, %v483
    %v485 = vrot.slane %v484, 2
    %v486 = vadd.f32 %v484, %v485
    %v487 = vrot.slane %v486, 1
    %v488 = vadd.f32 %v486, %v487
    %v489 = vsel %vm162, %v481, 0.0
    %v490 = vrot.slane %v489, 4
    %v491 = vadd.f32 %v489, %v490
    %v492 = vrot.slane %v491, 2
    %v493 = vadd.f32 %v491, %v492
    %v494 = vrot.slane %v493, 1
    %v495 = vadd.f32 %v493, %v494
    %v496 = vpack.c.bf16 %v488, %v488
    %v497 = vpack.c.bf16 %v495, %v495
    %v498 = vld [vmem:[#allocation10] sm:$0xf]
    %v499 = vld [vmem:[#allocation10 + $0x4] sm:$0xf]
    %v500 = vld [vmem:[#allocation10 + $0x8] sm:$0xf]
    %v501 = vld [vmem:[#allocation10 + $0xc] sm:$0xf]
    %v504 = vunpack.c.l.b16 %v496
    %v505 = vunpack.c.l.b16 %v497
    %vm506 = vcmask 1041409
    %v507 = vsel %vm506, %v505, %v504
    %v508 = vpack.c.b16 %v507, %v507
    %v513 = vunpack.c.l.b16 %v498
    %v514 = vunpack.c.l.b16 %v499
    %v515 = vunpack.c.l.b16 %v500
    %v516 = vunpack.c.l.b16 %v501
    %v517 = vpack.c.b16 %v514, %v513
    %v518 = vpack.c.b16 %v516, %v515
    %v522 = vsel %vm162, %v508, 0
    %524 = vmatprep.subr.bf16.mxu0 0
    %525 = vmatpush1.bf16.msra.mxu0 0
    %526 = vmatprep.subr.bf16.mxu0 0
    %527 = vmatpush1.bf16.msra.mxu0 0
    %528 = vmatprep.subr.bf16.mxu0 0
    %529 = vmatpush1.bf16.msra.mxu0 0
    %530 = vmatprep.subr.bf16.mxu0 0
    %531 = vmatpush1.bf16.msra.mxu0 0
    %532 = vmatprep.subr.bf16.mxu0 0
    %533 = vmatpush1.bf16.msra.mxu0 0
    %534 = vmatprep.subr.bf16.mxu0 0
    %535 = vmatpush1.bf16.msra.mxu0 0
    %536 = vmatprep.subr.bf16.mxu0 0
    %537 = vmatpush1.bf16.msra.mxu0 %v518
    %538 = vmatprep.subr.bf16.mxu0 0
    %539 = vmatpush1.bf16.msra.mxu0 %v517
    %540 = vmatprep.subr.bf16.mxu0 0
    %541 = vmatpush2.bf16.msra.mxu0 0
    %542 = vmatprep.subr.bf16.mxu0 0
    %543 = vmatpush2.bf16.msra.mxu0 0
    %544 = vmatprep.subr.bf16.mxu0 0
    %545 = vmatpush2.bf16.msra.mxu0 0
    %546 = vmatprep.subr.bf16.mxu0 0
    %547 = vmatpush2.bf16.msra.mxu0 0
    %548 = vmatprep.subr.bf16.mxu0 0
    %549 = vmatpush2.bf16.msra.mxu0 0
    %550 = vmatprep.subr.bf16.mxu0 0
    %551 = vmatpush2.bf16.msra.mxu0 0
    %552 = vmatprep.subr.bf16.mxu0 0
    %553 = vmatpush2.bf16.msra.mxu0 0
    %554 = vmatprep.subr.bf16.mxu0 0
    %555 = vmatpush2.bf16.msra.mxu0 0
    %556 = vmatprep.mubr.bf16.mxu0 0
    %557 = vmatmul.mubr.bf16.gmra.mxu0 %v522
    %v558 = vpop.f32.mrf.mxu0
    %v559 = vadd.f32 0.0, %v558
    %v560 = vpop.f32.mrf.mxu0
    %v561 = vpop.f32.mrf.mxu0
    %v562 = vpop.f32.mrf.mxu0
    %563 = vdwg.mxu0
    %v564 = vpack.c.bf16 %v559, %v559
    %v565 = vld [vmem:[#allocation11] sm:$0xf]
    %v566 = vld [vmem:[#allocation11 + $0x4] sm:$0xf]
    %v567 = vld [vmem:[#allocation11 + $0x8] sm:$0xf]
    %v568 = vld [vmem:[#allocation11 + $0xc] sm:$0xf]
    %v569 = vld [vmem:[#allocation13] sm:$0x1]
    %v571 = vlaneseq
    %v572 = vshrl.u32 %v571, 7
    %v573 = vsub.s32 0, %v572
    %v574 = vrot.slane %v569, %v573
    %v580 = vunpack.c.l.b16 %v565
    %v581 = vunpack.c.l.b16 %v566
    %v582 = vunpack.c.l.b16 %v567
    %v583 = vunpack.c.l.b16 %v568
    %v584 = vpack.c.b16 %v581, %v580
    %v585 = vpack.c.b16 %v583, %v582
    %v589 = vsel %vm162, %v564, 0
    %591 = vmatprep.subr.bf16.mxu0 0
    %592 = vmatpush1.bf16.msra.mxu0 0
    %593 = vmatprep.subr.bf16.mxu0 0
    %594 = vmatpush1.bf16.msra.mxu0 0
    %595 = vmatprep.subr.bf16.mxu0 0
    %596 = vmatpush1.bf16.msra.mxu0 0
    %597 = vmatprep.subr.bf16.mxu0 0
    %598 = vmatpush1.bf16.msra.mxu0 0
    %599 = vmatprep.subr.bf16.mxu0 0
    %600 = vmatpush1.bf16.msra.mxu0 0
    %601 = vmatprep.subr.bf16.mxu0 0
    %602 = vmatpush1.bf16.msra.mxu0 0
    %603 = vmatprep.subr.bf16.mxu0 0
    %604 = vmatpush1.bf16.msra.mxu0 %v585
    %605 = vmatprep.subr.bf16.mxu0 0
    %606 = vmatpush1.bf16.msra.mxu0 %v584
    %607 = vmatprep.subr.bf16.mxu0 0
    %608 = vmatpush2.bf16.msra.mxu0 0
    %609 = vmatprep.subr.bf16.mxu0 0
    %610 = vmatpush2.bf16.msra.mxu0 0
    %611 = vmatprep.subr.bf16.mxu0 0
    %612 = vmatpush2.bf16.msra.mxu0 0
    %613 = vmatprep.subr.bf16.mxu0 0
    %614 = vmatpush2.bf16.msra.mxu0 0
    %615 = vmatprep.subr.bf16.mxu0 0
    %616 = vmatpush2.bf16.msra.mxu0 0
    %617 = vmatprep.subr.bf16.mxu0 0
    %618 = vmatpush2.bf16.msra.mxu0 0
    %619 = vmatprep.subr.bf16.mxu0 0
    %620 = vmatpush2.bf16.msra.mxu0 0
    %621 = vmatprep.subr.bf16.mxu0 0
    %622 = vmatpush2.bf16.msra.mxu0 0
    %623 = vmatprep.mubr.bf16.mxu0 0
    %624 = vmatmul.mubr.bf16.gmra.mxu0 %v589
    %v625 = vpop.f32.mrf.mxu0
    %v626 = vadd.f32 %v574, %v625
    %v627 = vpop.f32.mrf.mxu0
    %v628 = vpop.f32.mrf.mxu0
    %v629 = vpop.f32.mrf.mxu0
    %630 = vdwg.mxu0
    %v631 = vmul.f32 %v626, 0.5
    %v632 = vmul.f32 %v626, 0.70710677
    %vm633 = vcmp.ge.f32.partialorder %v632, 0.0
    %v634 = vsel %vm633, 1.0, -1.0
    %v635 = vand.u32 2147483647, %v632
    %v636 = vmul.f32 %v635, 0.3275911
    %v637 = vadd.f32 %v636, 1.0
    %v638 = vrcp.pop %v637
    %v639 = vmul.f32 %v638, 1.0614054
    %v640 = vadd.f32 %v639, -1.4531521
    %v641 = vmul.f32 %v640, %v638
    %v642 = vadd.f32 %v641, 1.4214138
    %v643 = vmul.f32 %v642, %v638
    %v644 = vadd.f32 %v643, -0.28449672
    %v645 = vmul.f32 %v644, %v638
    %v646 = vadd.f32 %v645, 0.2548296
    %v647 = vmul.f32 %v646, %v638
    %v648 = vsub.f32 0.0, %v635
    %v649 = vmul.f32 %v648, %v635
    %v650 = vmul.f32 %v649, 1.442695
    %v651 = vpow.pop %v650
    %v652 = vmul.f32 %v647, %v651
    %v653 = vsub.f32 1.0, %v652
    %v654 = vmul.f32 %v634, %v653
    %v655 = vadd.f32 %v654, 1.0
    %v656 = vmul.f32 %v631, %v655
    %v657 = vpack.c.bf16 %v656, %v656
    %v658 = vld [vmem:[%s10] sm:$0xf]
    %v659 = vld [vmem:[%s10 + $0x4] sm:$0xf]
    %v660 = vld [vmem:[%s10 + $0x8] sm:$0xf]
    %v661 = vld [vmem:[%s10 + $0xc] sm:$0xf]
    %v662 = vld [vmem:[%s10 + $0x10] sm:$0xf]
    %v663 = vld [vmem:[%s10 + $0x14] sm:$0xf]
    %v664 = vld [vmem:[%s10 + $0x18] sm:$0xf]
    %v665 = vld [vmem:[%s10 + $0x1c] sm:$0xf]
    %v666 = vld [vmem:[%s11] sm:$0x1]
    %v668 = vlaneseq
    %v669 = vshrl.u32 %v668, 7
    %v670 = vsub.s32 0, %v669
    %v671 = vrot.slane %v666, %v670
    %v681 = vunpack.c.l.b16 %v658
    %v682 = vunpack.c.l.b16 %v659
    %v683 = vunpack.c.l.b16 %v660
    %v684 = vunpack.c.l.b16 %v661
    %v685 = vunpack.c.l.b16 %v662
    %v686 = vunpack.c.l.b16 %v663
    %v687 = vunpack.c.l.b16 %v664
    %v688 = vunpack.c.l.b16 %v665
    %v689 = vpack.c.b16 %v682, %v681
    %v690 = vpack.c.b16 %v684, %v683
    %v691 = vpack.c.b16 %v686, %v685
    %v692 = vpack.c.b16 %v688, %v687
    %v698 = vsel %vm299, %v657, 0
    %700 = vmatprep.subr.bf16.mxu0 0
    %701 = vmatpush1.bf16.msra.mxu0 0
    %702 = vmatprep.subr.bf16.mxu0 0
    %703 = vmatpush1.bf16.msra.mxu0 0
    %704 = vmatprep.subr.bf16.mxu0 0
    %705 = vmatpush1.bf16.msra.mxu0 0
    %706 = vmatprep.subr.bf16.mxu0 0
    %707 = vmatpush1.bf16.msra.mxu0 0
    %708 = vmatprep.subr.bf16.mxu0 0
    %709 = vmatpush1.bf16.msra.mxu0 %v692
    %710 = vmatprep.subr.bf16.mxu0 0
    %711 = vmatpush1.bf16.msra.mxu0 %v691
    %712 = vmatprep.subr.bf16.mxu0 0
    %713 = vmatpush1.bf16.msra.mxu0 %v690
    %714 = vmatprep.subr.bf16.mxu0 0
    %715 = vmatpush1.bf16.msra.mxu0 %v689
    %716 = vmatprep.subr.bf16.mxu0 0
    %717 = vmatpush2.bf16.msra.mxu0 0
    %718 = vmatprep.subr.bf16.mxu0 0
    %719 = vmatpush2.bf16.msra.mxu0 0
    %720 = vmatprep.subr.bf16.mxu0 0
    %721 = vmatpush2.bf16.msra.mxu0 0
    %722 = vmatprep.subr.bf16.mxu0 0
    %723 = vmatpush2.bf16.msra.mxu0 0
    %724 = vmatprep.subr.bf16.mxu0 0
    %725 = vmatpush2.bf16.msra.mxu0 0
    %726 = vmatprep.subr.bf16.mxu0 0
    %727 = vmatpush2.bf16.msra.mxu0 0
    %728 = vmatprep.subr.bf16.mxu0 0
    %729 = vmatpush2.bf16.msra.mxu0 0
    %730 = vmatprep.subr.bf16.mxu0 0
    %731 = vmatpush2.bf16.msra.mxu0 0
    %732 = vmatprep.mubr.bf16.mxu0 0
    %733 = vmatmul.mubr.bf16.gmra.mxu0 %v698
    %v734 = vpop.f32.mrf.mxu0
    %v735 = vadd.f32 %v671, %v734
    %v736 = vpop.f32.mrf.mxu0
    %v737 = vpop.f32.mrf.mxu0
    %v738 = vpop.f32.mrf.mxu0
    %739 = vdwg.mxu0
    %vm740 = vcmask 1041408
    %v741 = vsel %vm740, %v735, -inf
    %742 = vmax.xlane.f32.xlu0 %v741
    %v743 = vpop.xlane.xlu0 %742
    %v744 = vsub.f32 %v735, %v743
    %v745 = vmul.f32 %v744, 1.442695
    %v746 = vpow.pop %v745
    %v747 = vsel %vm740, %v746, 0.0
    %748 = vadd.xlane.f32.xlu0 %v747
    %v749 = vpop.xlane.xlu0 %748
    %v750 = vrcp.pop %v749
    %v751 = vmul.f32 %v746, %v750
    %752 = vst [vmem:[#allocation14] sm:$0x3] %v751
    // Predicated region
    $region78: #{tpu_custom_call.1} parent=1 // pred_check
      _
    $region79: #{tpu_custom_call.1} parent=1 // pred_check_branch
      %754 = sbr.rel (0) target = $region81
    $region80: #{tpu_custom_call.1} parent=1 // pred_region
      %s756 = ssub.s32 32, 32
      %757 = vsyncadd [#allocation4], %s756
      %s759 = sshll.u32 [#allocation14], 4
      %s760 = int_to_ptr.vmem [resolvable:$true] %s759
      %762 = dma.vmem_to_hbm [thread:$0]  %s760, 32, %s12, [#allocation4]
    $region81: #{tpu_custom_call.1} parent=1 // pred_fallthru
      _
    // Predicated region
    $region82: #{tpu_custom_call.1} parent=1 // pred_check
      _
    $region83: #{tpu_custom_call.1} parent=1 // pred_check_branch
      %764 = sbr.rel (0) target = $region85
    $region84: #{tpu_custom_call.1} parent=1 // pred_region
      %765 = dma.done [#allocation4], 32
    $region85: #{tpu_custom_call.1} parent=1 // pred_fallthru
      _
    %766 = vsyncpa [#allocation3], 1
    %767 = vsyncpa [#allocation6], 1
    %768 = vsyncpa [#allocation9], 1
    %769 = vsyncpa [#allocation12], 1
    %770 = vsyncpa [#allocation4], 1

</llo_original>
